<compile_context>
chip_gen: v7x
topology: tpu7x:2x2x1
jax: 0.10.0
libtpu: 0.0.40
codegen_flags: <defaults>
</compile_context>

<pallas_src>
import jax
import jax.numpy as jnp
from jax import lax
from jax.experimental import pallas as pl
from jax.experimental.pallas import tpu as pltpu


def attention_kernel(x_ref, v_ref, len_ref, rep_ref, att_ref):
    x = x_ref[...]                                   # (TB, T, H) native dtype
    v = v_ref[...].astype(x.dtype)                   # (1, 1, H)  tiny
    lengths = len_ref[...]                           # (TB, 1) int32
    TB, T, H = x.shape

    # logits[b, t] = sum_h x[b, t, h] * v[h]
    # Native-dtype multiply feeding an f32 lane-axis reduce; no persistent
    # f32 copy of the whole tile is kept live.
    logits = jnp.sum((x * v).astype(jnp.float32), axis=-1)      # (TB, T) f32

    # Per-row max: softmax is shift-invariant, so this matches torch's
    # global-max formulation exactly while keeping batch tiles independent.
    m = jnp.max(logits, axis=-1, keepdims=True)                 # (TB, 1)
    unnorm = jnp.exp(logits - m)                                # (TB, T)

    idx = lax.broadcasted_iota(jnp.int32, (TB, T), 1)
    mask = (idx < lengths).astype(jnp.float32)                  # (TB, T)
    masked = unnorm * mask

    denom = jnp.sum(masked, axis=-1, keepdims=True)             # (TB, 1)
    # Exact reciprocal of a tiny (TB,1) tensor: rows sum to exactly 1, like
    # torch's masked_weights.div(att_sums).  (length==0 rows give inf/NaN,
    # same as the reference.)
    inv = pl.reciprocal(denom, approx=False)
    att = masked * inv                                          # (TB, T) f32

    # representations[b, h] = sum_t att[b, t] * x[b, t, h]
    # VPU multiply + sublane-axis (T) reduce with f32 accumulation.  The
    # vector slots have slack in this HBM-bound kernel; a per-row (1,T)x(T,H)
    # MXU matmul would saturate the MXU-push slot instead.
    weighted = (x * att[:, :, None].astype(x.dtype)).astype(jnp.float32)
    rep = jnp.sum(weighted, axis=1)                             # (TB, H) f32

    rep_ref[...] = rep.astype(rep_ref.dtype)
    att_ref[...] = att.astype(att_ref.dtype)


def _round_up(x, m):
    return ((x + m - 1) // m) * m


# itemsize -> sublane packing factor for the second-minor dim
_SUBLANE = {4: 8, 2: 16, 1: 32}


def _vmem_capacity_bytes():
    try:
        return int(pltpu.get_tpu_info().vmem_capacity_bytes)
    except Exception:
        # Conservative fallback: v7x per-TensorCore VMEM.
        return 64 * 1024 * 1024


def _choose_tiling(B, T, H, itemsize):
    """Pick (block_b, vmem_limit_bytes) from the *padded* VMEM footprint of
    every buffer kept live per grid step, per TPU generation."""
    cap = _vmem_capacity_bytes()
    # Use most of physical VMEM but leave headroom for compiler scratch.
    # v5e/v6e (128 MiB) -> 96 MiB limit; v7x (64 MiB/TC) -> 48 MiB limit.
    vmem_limit = min(int(cap * 3 // 4), 96 * 1024 * 1024)
    budget = int(vmem_limit * 0.8)

    sub = _SUBLANE.get(itemsize, 8)
    t_pad = _round_up(T, sub)          # sublane padding of T in the x tile
    h_pad = _round_up(H, 128)          # lane padding of H
    t_lane = _round_up(T, 128)         # lane padding of T in the att output

    x_row = t_pad * h_pad * itemsize             # padded x bytes per batch row
    f32_row = _round_up(T, 8) * h_pad * 4        # f32 'weighted' temp per row
    att_row = t_lane * 4                         # att (f32) output per row
    rep_row = h_pad * 4                          # rep (f32) output per row

    per_row = (2 * x_row                 # double-buffered input DMA
               + x_row + f32_row         # elementwise temporaries
               + 2 * (att_row + rep_row))  # double-buffered outputs
    per_row = max(per_row, 1)

    bb = budget // per_row
    if bb >= B:
        return B, vmem_limit
    if bb < 8:
        # A single 8-row tile already exceeds the target: clamp to the sublane
        # minimum for the 2-D output blocks and spend more of physical VMEM.
        # TODO(synk): for very long sequences add a T-tiling grid axis with an
        # online-softmax style accumulator instead of clamping.
        return 8, min(cap - 2 * 1024 * 1024, 112 * 1024 * 1024)
    return (bb // 8) * 8, vmem_limit


def attention_forward(inputs, attention_vector, input_lengths,
                      return_attention=True, block_b=None):
    """inputs: (B, T, H); attention_vector: (H,); input_lengths: (B,) int."""
    B, T, H = inputs.shape
    itemsize = jnp.dtype(inputs.dtype).itemsize

    auto_block, vmem_limit = _choose_tiling(B, T, H, itemsize)
    if block_b is None:
        block_b = auto_block
    block_b = int(min(block_b, B))
    if block_b < B and block_b % 8 != 0:
        # When tiling, the 2-D output blocks need a sublane-multiple batch dim.
        block_b = min(B, max(8, (block_b // 8) * 8))

    b_pad = _round_up(B, block_b)

    v2 = attention_vector.reshape(1, 1, H).astype(jnp.float32)
    lens = input_lengths.reshape(B, 1).astype(jnp.int32)

    x = inputs
    if b_pad != B:
        pad = b_pad - B
        x = jnp.pad(x, ((0, pad), (0, 0), (0, 0)))
        # pad lengths with T so padded rows stay finite (they are sliced off)
        lens = jnp.pad(lens, ((0, pad), (0, 0)), constant_values=T)

    grid = (b_pad // block_b,)

    # TODO(synk): with H < 128 the x tile and rep output are mostly lane
    # padding (and att stores are masked vst); a wrapper-side relayout that
    # makes the last dim a multiple of 128 (e.g. collapsing (T,H) or packing
    # batch rows) would remove that waste.
    rep, att = pl.pallas_call(
        attention_kernel,
        out_shape=(
            jax.ShapeDtypeStruct((b_pad, H), jnp.float32),
            jax.ShapeDtypeStruct((b_pad, T), jnp.float32),
        ),
        grid=grid,
        in_specs=[
            pl.BlockSpec((block_b, T, H), lambda i: (i, 0, 0)),
            pl.BlockSpec((1, 1, H), lambda i: (0, 0, 0)),
            pl.BlockSpec((block_b, 1), lambda i: (i, 0)),
        ],
        out_specs=(
            pl.BlockSpec((block_b, H), lambda i: (i, 0)),
            pl.BlockSpec((block_b, T), lambda i: (i, 0)),
        ),
        compiler_params=pltpu.CompilerParams(
            # TODO(synk): on v7x, if the trace shows only one busy TensorCore,
            # switch this axis to pltpu.CORE_PARALLEL (and halve the per-TC
            # tile budget) to split batch tiles across both cores.
            dimension_semantics=("parallel",),
            vmem_limit_bytes=int(vmem_limit),
        ),
    )(x, v2, lens)

    rep = rep[:B]
    att = att[:B]
    return rep, (att if return_attention else None)


def _reference(inputs, attention_vector, input_lengths):
    # Pure-JAX reference mirroring the PyTorch forward (global max, divide).
    xf = inputs.astype(jnp.float32)
    logits = xf @ attention_vector.astype(jnp.float32)          # (B, T)
    unnorm = jnp.exp(logits - jnp.max(logits))
    T = inputs.shape[1]
    mask = (jnp.arange(T)[None, :] < input_lengths[:, None]).astype(jnp.float32)
    masked = unnorm * mask
    att = masked / jnp.sum(masked, axis=1, keepdims=True)
    rep = jnp.sum(xf * att[:, :, None], axis=1)
    return rep, att


if __name__ == "__main__":
    # Small shapes consistent with the module: batch=2, seq=8, attention_size=32
    B, T, H = 2, 8, 32
    key = jax.random.PRNGKey(0)
    k_x, k_v = jax.random.split(key)

    inputs = jax.random.normal(k_x, (B, T, H), dtype=jnp.float32)
    # Parameter init: normal_(std=0.05), deterministic
    attention_vector = 0.05 * jax.random.normal(k_v, (H,), dtype=jnp.float32)
    input_lengths = jnp.array([T, 5], dtype=jnp.int32)

    rep, att = attention_forward(inputs, attention_vector, input_lengths, True)
    rep = jax.block_until_ready(rep)
    att = jax.block_until_ready(att)

    rep_ref, att_ref = _reference(inputs, attention_vector, input_lengths)
    assert jnp.allclose(rep, rep_ref, atol=1e-4, rtol=1e-4), "rep mismatch"
    assert jnp.allclose(att, att_ref, atol=1e-4, rtol=1e-4), "att mismatch"

    # Exercise the tiled multi-step grid path (batch padding + block_b=8).
    B2, T2, H2 = 10, 16, 32
    k2x, k2l = jax.random.split(jax.random.PRNGKey(1))
    inputs2 = jax.random.normal(k2x, (B2, T2, H2), dtype=jnp.float32)
    lengths2 = jax.random.randint(k2l, (B2,), 1, T2 + 1, dtype=jnp.int32)
    rep2, att2 = attention_forward(inputs2, attention_vector, lengths2,
                                   True, block_b=8)
    rep2 = jax.block_until_ready(rep2)
    att2 = jax.block_until_ready(att2)
    rep2_ref, att2_ref = _reference(inputs2, attention_vector, lengths2)
    assert jnp.allclose(rep2, rep2_ref, atol=1e-4, rtol=1e-4), "rep2 mismatch"
    assert jnp.allclose(att2, att2_ref, atol=1e-4, rtol=1e-4), "att2 mismatch"

    print("KERNEL_OK")
</pallas_src>

<mosaic_0001>
module attributes {stable_mosaic.version = 11 : i64} {
  func.func @attention_kernel(%arg0: i32, %arg1: memref<2x8x32xf32, #tpu.memory_space<vmem>>, %arg2: memref<1x1x32xf32, #tpu.memory_space<vmem>>, %arg3: memref<2x1xi32, #tpu.memory_space<vmem>>, %arg4: memref<2x32xf32, #tpu.memory_space<vmem>>, %arg5: memref<2x8xf32, #tpu.memory_space<vmem>>) attributes {dimension_semantics = [#tpu.dimension_semantics<parallel>], iteration_bounds = array<i64: 1>, scalar_prefetch = 0 : i64, scratch_operands = 0 : i64, tpu.core_type = #tpu.core_type<tc>, window_params = [{transform_indices = @transform_0, window_bounds = array<i64: 2, 8, 32>}, {pipeline_mode = #tpu.pipeline_mode<synchronous>, transform_indices = @transform_1, window_bounds = array<i64: 1, 1, 32>}, {transform_indices = @transform_2, window_bounds = array<i64: 2, 1>}, {transform_indices = @transform_3, window_bounds = array<i64: 2, 32>}, {transform_indices = @transform_4, window_bounds = array<i64: 2, 8>}]} {
    %c0 = arith.constant 0 : index
    %c0_0 = arith.constant 0 : index
    %c0_1 = arith.constant 0 : index
    %0 = vector.load %arg1[%c0, %c0_0, %c0_1] : memref<2x8x32xf32, #tpu.memory_space<vmem>>, vector<2x8x32xf32>
    %c0_2 = arith.constant 0 : index
    %c0_3 = arith.constant 0 : index
    %c0_4 = arith.constant 0 : index
    %1 = vector.load %arg2[%c0_2, %c0_3, %c0_4] : memref<1x1x32xf32, #tpu.memory_space<vmem>>, vector<1x1x32xf32>
    %c0_5 = arith.constant 0 : index
    %c0_6 = arith.constant 0 : index
    %2 = vector.load %arg3[%c0_5, %c0_6] : memref<2x1xi32, #tpu.memory_space<vmem>>, vector<2x1xi32>
    %3 = vector.broadcast %1 : vector<1x1x32xf32> to vector<2x8x32xf32>
    %4 = arith.mulf %0, %3 : vector<2x8x32xf32>
    %cst = arith.constant dense<0.000000e+00> : vector<2x8xf32>
    %5 = vector.multi_reduction <add>, %4, %cst [2] : vector<2x8x32xf32> to vector<2x8xf32>
    %cst_7 = arith.constant dense<0xFF800000> : vector<2xf32>
    %6 = vector.multi_reduction <maximumf>, %5, %cst_7 [1] : vector<2x8xf32> to vector<2xf32>
    %7 = vector.shape_cast %6 : vector<2xf32> to vector<2x1xf32>
    %8 = vector.broadcast %7 : vector<2x1xf32> to vector<2x8xf32>
    %9 = arith.subf %5, %8 : vector<2x8xf32>
    %10 = math.exp %9 : vector<2x8xf32>
    %11 = tpu.iota {dimensions = array<i32: 1>} : vector<2x8xi32>
    %12 = vector.broadcast %2 : vector<2x1xi32> to vector<2x8xi32>
    %13 = arith.cmpi slt, %11, %12 : vector<2x8xi32>
    %14 = arith.extui %13 : vector<2x8xi1> to vector<2x8xi32>
    %15 = arith.sitofp %14 : vector<2x8xi32> to vector<2x8xf32>
    %16 = arith.mulf %10, %15 : vector<2x8xf32>
    %cst_8 = arith.constant dense<0.000000e+00> : vector<2xf32>
    %17 = vector.multi_reduction <add>, %16, %cst_8 [1] : vector<2x8xf32> to vector<2xf32>
    %18 = vector.shape_cast %17 : vector<2xf32> to vector<2x1xf32>
    %19 = tpu.reciprocal %18 : vector<2x1xf32> -> vector<2x1xf32>
    %20 = vector.broadcast %19 : vector<2x1xf32> to vector<2x8xf32>
    %21 = arith.mulf %16, %20 : vector<2x8xf32>
    %22 = vector.shape_cast %21 : vector<2x8xf32> to vector<2x8x1xf32>
    %23 = vector.broadcast %22 : vector<2x8x1xf32> to vector<2x8x32xf32>
    %24 = arith.mulf %0, %23 : vector<2x8x32xf32>
    %cst_9 = arith.constant dense<0.000000e+00> : vector<2x32xf32>
    %25 = vector.multi_reduction <add>, %24, %cst_9 [1] : vector<2x8x32xf32> to vector<2x32xf32>
    %c0_10 = arith.constant 0 : index
    %c0_11 = arith.constant 0 : index
    %26 = vector.load %arg4[%c0_10, %c0_11] : memref<2x32xf32, #tpu.memory_space<vmem>>, vector<2x32xf32>
    tpu.vector_store %arg4[%c0_10, %c0_11], %25 {strides = array<i32>} : memref<2x32xf32, #tpu.memory_space<vmem>>, vector<2x32xf32>,
    %c0_12 = arith.constant 0 : index
    %c0_13 = arith.constant 0 : index
    %27 = vector.load %arg5[%c0_12, %c0_13] : memref<2x8xf32, #tpu.memory_space<vmem>>, vector<2x8xf32>
    tpu.vector_store %arg5[%c0_12, %c0_13], %21 {strides = array<i32>} : memref<2x8xf32, #tpu.memory_space<vmem>>, vector<2x8xf32>,
    return
  }
  func.func @transform_0(%arg0: i32) -> (i32, i32, i32) {
    %c0_i32 = arith.constant 0 : i32
    %c0_i32_0 = arith.constant 0 : i32
    %c0_i32_1 = arith.constant 0 : i32
    return %arg0, %c0_i32, %c0_i32_0 : i32, i32, i32
  }
  func.func @transform_1(%arg0: i32) -> (i32, i32, i32) {
    %c0_i32 = arith.constant 0 : i32
    %c0_i32_0 = arith.constant 0 : i32
    %c0_i32_1 = arith.constant 0 : i32
    %c0_i32_2 = arith.constant 0 : i32
    return %c0_i32, %c0_i32_0, %c0_i32_1 : i32, i32, i32
  }
  func.func @transform_2(%arg0: i32) -> (i32, i32) {
    %c0_i32 = arith.constant 0 : i32
    %c0_i32_0 = arith.constant 0 : i32
    return %arg0, %c0_i32 : i32, i32
  }
  func.func @transform_3(%arg0: i32) -> (i32, i32) {
    %c0_i32 = arith.constant 0 : i32
    %c0_i32_0 = arith.constant 0 : i32
    return %arg0, %c0_i32 : i32, i32
  }
  func.func @transform_4(%arg0: i32) -> (i32, i32) {
    %c0_i32 = arith.constant 0 : i32
    %c0_i32_0 = arith.constant 0 : i32
    return %arg0, %c0_i32 : i32, i32
  }
}

</mosaic_0001>

<llo_original>
// kernel: tpu_custom_call.1
$region0: #{tpu_custom_call.1}
  #allocation0 [shape = 'u32[]', space=smem, size = 0x4, offset = 0x4, fixed_abs, tag = 'smem constant byte address 0x4 - core index']
  #allocation1 [shape = 'u32[144,128]{1,0:T(1,128)}', space=vmem, size = 0x12000, scoped, tag = 'internal scratch']
  %s0 = inlined_call_operand.hbm [shape: f32[2,8,32], index: 0, kind: input, shape index: {}]
  %s1 = inlined_call_operand.vmem [shape: f32[1,1,32], index: 1, kind: input, shape index: {}]
  %s2 = inlined_call_operand.vmem [shape: s32[2,1], index: 2, kind: input, shape index: {}]
  %s3 = inlined_call_operand.hbm [shape: f32[2,32], index: 3, kind: output, shape index: {0}]
  %s4 = inlined_call_operand.hbm [shape: f32[2,8], index: 4, kind: output, shape index: {1}]
  %5 = xla_tuple %s3, %s4
  %s6 = sld [smem:[#allocation0]]
  $region34: #{tpu_custom_call.1} parent=0
    _
  %s8 = ssub.s32 1, %s6
  %s9 = scalar_select 0, %s8, %s6
  $region1: #{tpu_custom_call.1} parent=0
    #allocation2 [shape = 'u8[8192]{0}', space=vmem, size = 0x2000, scoped, tag = 'input window, operand 0, single buffered']
    #allocation3 [shape = 's32[1]{0}', space=sflag, size = 0x4, scoped, tag = 'scoped memory for tpu_custom_call.1']
    #allocation4 [shape = 's32[1]{0}', space=sflag, size = 0x4, scoped, tag = 'scoped memory for tpu_custom_call.1']
    #allocation5 [shape = 'u8[1024]{0}', space=vmem, size = 0x400, scoped, tag = 'output window, operand 0, single buffered']
    #allocation6 [shape = 'u8[1024]{0}', space=vmem, size = 0x400, scoped, tag = 'output window, operand 1, single buffered']
    #allocation7 [shape = 's32[1]{0}', space=sflag, size = 0x4, scoped, tag = 'scoped memory for tpu_custom_call.1']
    %10 = vsyncpa [#allocation3], 0
    %11 = vsyncpa [#allocation4], 0
    %12 = vsyncpa [#allocation7], 0
    // Predicated region
    $region2: #{tpu_custom_call.1} parent=1 // pred_check
      _
    $region3: #{tpu_custom_call.1} parent=1 // pred_check_branch
      %14 = sbr.rel (0) target = $region5
    $region4: #{tpu_custom_call.1} parent=1 // pred_region
      %s16 = ssub.s32 256, 256
      %17 = vsyncadd [#allocation3], %s16
      %s18 = sshll.u32 [#allocation2], 4
      %s19 = int_to_ptr.vmem [resolvable:$true] %s18
      %24 = dma.hbm_to_vmem [thread:$0]  %s0, 256, %s19, [#allocation3], 128, 128, 8
    $region5: #{tpu_custom_call.1} parent=1 // pred_fallthru
      _
    // Predicated region
    $region6: #{tpu_custom_call.1} parent=1 // pred_check
      _
    $region7: #{tpu_custom_call.1} parent=1 // pred_check_branch
      %26 = sbr.rel (0) target = $region9
    $region8: #{tpu_custom_call.1} parent=1 // pred_region
      _
    $region9: #{tpu_custom_call.1} parent=1 // pred_fallthru
      _
    // Predicated region
    $region10: #{tpu_custom_call.1} parent=1 // pred_check
      _
    $region11: #{tpu_custom_call.1} parent=1 // pred_check_branch
      %28 = sbr.rel (0) target = $region13
    $region12: #{tpu_custom_call.1} parent=1 // pred_region
      _
    $region13: #{tpu_custom_call.1} parent=1 // pred_fallthru
      _
    // Predicated region
    $region14: #{tpu_custom_call.1} parent=1 // pred_check
      _
    $region15: #{tpu_custom_call.1} parent=1 // pred_check_branch
      %30 = sbr.rel (0) target = $region17
    $region16: #{tpu_custom_call.1} parent=1 // pred_region
      %31 = dma.done [#allocation3], 256
    $region17: #{tpu_custom_call.1} parent=1 // pred_fallthru
      _
    %v32 = vld [vmem:[#allocation2] sm:$0xff]
    %v33 = vld [vmem:[#allocation2 + $0x8] sm:$0xff]
    %v34 = vld [vmem:[%s1] sm:$0x1]
    %v35 = vld [vmem:[%s2] sm:$0x3]
    %v37 = vlaneseq
    %v38 = vshrl.u32 %v37, 7
    %v39 = vsub.s32 0, %v38
    %v40 = vrot.slane %v34, %v39
    %v42 = vmul.f32 %v32, %v40
    %v43 = vmul.f32 %v33, %v40
    %vm44 = vcmask 261120
    %v45 = vsel %vm44, %v42, 0.0
    %46 = vadd.xlane.f32.xlu0 %v45
    %v47 = vpop.xlane.xlu0 %46
    %v48 = vsel %vm44, %v43, 0.0
    %49 = vadd.xlane.f32.xlu0 %v48
    %v50 = vpop.xlane.xlu0 %49
    %v53 = vlaneseq
    %v54 = vand.u32 %v53, 127
    %v55 = vlaneseq
    %v56 = vshrl.u32 %v55, 7
    %v57 = vsub.s32 %v54, %v56
    %v58 = vrot.slane %v47, %v57
    %v59 = vlaneseq
    %v60 = vshrl.u32 %v59, 7
    %v61 = vsub.s32 %v54, %v60
    %v62 = vrot.slane %v50, %v61
    %vm63 = vcmask 1041409
    %v64 = vsel %vm63, %v62, %v58
    %vm66 = vcmask 58368
    %v67 = vsel %vm66, %v64, -inf
    %68 = vmax.xlane.f32.xlu0 %v67
    %v69 = vpop.xlane.xlu0 %68
    %v71 = vlaneseq
    %v72 = vshrl.u32 %v71, 7
    %v73 = vsub.s32 0, %v72
    %v74 = vrot.slane %v69, %v73
    %v75 = vlaneseq
    %v76 = vshrl.u32 %v75, 7
    %v77 = vsub.s32 1, %v76
    %v78 = vrot.slane %v69, %v77
    %v81 = vsub.f32 %v47, %v74
    %v82 = vsub.f32 %v50, %v78
    %v83 = vmul.f32 %v81, 1.442695
    %v84 = vpow.pop %v83
    %v85 = vmul.f32 %v82, 1.442695
    %v86 = vpow.pop %v85
    %87 = vset.pattern.permute.xlu0 0
    %88 = vperm.xlu0 %87, %v35
    %v89 = vpop.permute.xlu0 %88
    %vm90 = vcmp.lt.s32.totalorder %v54, %v89
    %v91 = vsel %vm90, 1, 0
    %v92 = vcvt.s32.f32 %v91
    %v94 = vlaneseq
    %v95 = vshrl.u32 %v94, 7
    %v96 = vsub.s32 0, %v95
    %v97 = vrot.slane %v92, %v96
    %99 = vbcast.lane.b32.xlu0 %v97, 256
    %v100 = vpop.permute.xlu0 %99
    %v101 = vlaneseq
    %v102 = vshrl.u32 %v101, 7
    %v103 = vsub.s32 1, %v102
    %v104 = vrot.slane %v92, %v103
    %106 = vbcast.lane.b32.xlu0 %v104, 256
    %v107 = vpop.permute.xlu0 %106
    %v110 = vmul.f32 %v84, %v100
    %v111 = vmul.f32 %v86, %v107
    %114 = vset.pattern.permute.xlu0 0
    %115 = vperm.xlu0 %114, %v110
    %v116 = vpop.permute.xlu0 %115
    %117 = vset.pattern.permute.xlu0 0
    %118 = vperm.xlu0 %117, %v111
    %v119 = vpop.permute.xlu0 %118
    %v120 = vlaneseq
    %v121 = vshrl.u32 %v120, 7
    %v122 = vsub.s32 %v54, %v121
    %v123 = vrot.slane %v116, %v122
    %v124 = vlaneseq
    %v125 = vshrl.u32 %v124, 7
    %v126 = vsub.s32 %v54, %v125
    %v127 = vrot.slane %v119, %v126
    %v128 = vsel %vm63, %v127, %v123
    %v130 = vsel %vm66, %v128, 0.0
    %131 = vadd.xlane.f32.xlu0 %v130
    %v132 = vpop.xlane.xlu0 %131
    %v133 = vrcp.pop %v132
    %v135 = vlaneseq
    %v136 = vshrl.u32 %v135, 7
    %v137 = vsub.s32 0, %v136
    %v138 = vrot.slane %v133, %v137
    %v139 = vlaneseq
    %v140 = vshrl.u32 %v139, 7
    %v141 = vsub.s32 1, %v140
    %v142 = vrot.slane %v133, %v141
    %v145 = vmul.f32 %v110, %v138
    %v146 = vmul.f32 %v111, %v142
    %148 = vset.pattern.permute.xlu0 0
    %149 = vperm.xlu0 %148, %v145
    %v150 = vpop.permute.xlu0 %149
    %153 = vset.pattern.permute.xlu0 0
    %154 = vperm.xlu0 %153, %v146
    %v155 = vpop.permute.xlu0 %154
    %v157 = vmul.f32 %v32, %v150
    %v158 = vmul.f32 %v33, %v155
    %v159 = vsel %vm44, %v157, 0.0
    %v160 = vrot.slane %v159, 4
    %v161 = vadd.f32 %v159, %v160
    %v162 = vrot.slane %v161, 2
    %v163 = vadd.f32 %v161, %v162
    %v164 = vrot.slane %v163, 1
    %v165 = vadd.f32 %v163, %v164
    %v166 = vsel %vm44, %v158, 0.0
    %v167 = vrot.slane %v166, 4
    %v168 = vadd.f32 %v166, %v167
    %v169 = vrot.slane %v168, 2
    %v170 = vadd.f32 %v168, %v169
    %v171 = vrot.slane %v170, 1
    %v172 = vadd.f32 %v170, %v171
    %v175 = vsel %vm63, %v172, %v165
    %vm177 = vcmask 254976
    %178 = vst.msk [vmem:[#allocation5] sm:$0x3] %vm177, %v175
    %v179 = vlaneseq
    %v180 = vshrl.u32 %v179, 7
    %v181 = vsub.s32 %v54, %v180
    %v182 = vrot.slane %v150, %v181
    %v183 = vlaneseq
    %v184 = vshrl.u32 %v183, 7
    %v185 = vsub.s32 %v54, %v184
    %v186 = vrot.slane %v155, %v185
    %v187 = vsel %vm63, %v186, %v182
    %189 = vst.msk [vmem:[#allocation6] sm:$0x3] %vm66, %v187
    // Predicated region
    $region18: #{tpu_custom_call.1} parent=1 // pred_check
      _
    $region19: #{tpu_custom_call.1} parent=1 // pred_check_branch
      %191 = sbr.rel (0) target = $region21
    $region20: #{tpu_custom_call.1} parent=1 // pred_region
      %s193 = ssub.s32 32, 32
      %194 = vsyncadd [#allocation4], %s193
      %s196 = sshll.u32 [#allocation5], 4
      %s197 = int_to_ptr.vmem [resolvable:$true] %s196
      %199 = dma.vmem_to_hbm [thread:$0]  %s197, 32, %s3, [#allocation4]
    $region21: #{tpu_custom_call.1} parent=1 // pred_fallthru
      _
    // Predicated region
    $region22: #{tpu_custom_call.1} parent=1 // pred_check
      _
    $region23: #{tpu_custom_call.1} parent=1 // pred_check_branch
      %201 = sbr.rel (0) target = $region25
    $region24: #{tpu_custom_call.1} parent=1 // pred_region
      %s203 = ssub.s32 32, 32
      %204 = vsyncadd [#allocation7], %s203
      %s206 = sshll.u32 [#allocation6], 4
      %s207 = int_to_ptr.vmem [resolvable:$true] %s206
      %209 = dma.vmem_to_hbm [thread:$0]  %s207, 32, %s4, [#allocation7]
    $region25: #{tpu_custom_call.1} parent=1 // pred_fallthru
      _
    // Predicated region
    $region26: #{tpu_custom_call.1} parent=1 // pred_check
      _
    $region27: #{tpu_custom_call.1} parent=1 // pred_check_branch
      %211 = sbr.rel (0) target = $region29
    $region28: #{tpu_custom_call.1} parent=1 // pred_region
      %212 = dma.done [#allocation4], 32
    $region29: #{tpu_custom_call.1} parent=1 // pred_fallthru
      _
    // Predicated region
    $region30: #{tpu_custom_call.1} parent=1 // pred_check
      _
    $region31: #{tpu_custom_call.1} parent=1 // pred_check_branch
      %214 = sbr.rel (0) target = $region33
    $region32: #{tpu_custom_call.1} parent=1 // pred_region
      %215 = dma.done [#allocation7], 32
    $region33: #{tpu_custom_call.1} parent=1 // pred_fallthru
      _
    %216 = vsyncpa [#allocation3], 1
    %217 = vsyncpa [#allocation4], 1
    %218 = vsyncpa [#allocation7], 1

</llo_original>
